<compile_context>
chip_gen: v5e
topology: v5e:2x2
jax: 0.10.0
libtpu: 0.0.40
codegen_flags: <defaults>
</compile_context>

<pallas_src>
import jax
import jax.numpy as jnp
import numpy as np
from jax.experimental import pallas as pl
from jax.experimental.pallas import tpu as pltpu

NUM_SPATIAL_FILTERS = 32     # LF_CNN.num_spatial_filters
TEMPORAL_KERNEL = 7          # length_temporal_filter


# ----------------------------- fused Pallas kernel -----------------------------

def _make_fused_kernel(half: int):
    """Kernel body. Per-grid-step shapes (all resident in VMEM):
         xf_ref   : (bm, C*T)    raw row-major flatten of the (bm, C, T) input tile
         hcat_ref : (C*T, F*T)   folded spatial+view+conv operator,
                                 columns = [even-time outputs | odd-time outputs]
         bz_ref   : (1, F*T)     conv bias broadcast to the same column layout
         wfc_ref  : (F*T//2, N)  fc.weight.T (column order == torch .view(B,-1) order)
         bfc_ref  : (1, N)       fc.bias
         out_ref  : (bm, N)      logits tile
    """
    def kernel(xf_ref, hcat_ref, bz_ref, wfc_ref, bfc_ref, out_ref):
        # SpatialDeMixing + raw .view() reinterpretations + Conv1d (incl. bias):
        # one MXU matmul with a K-dim of C*T.
        z = jnp.dot(xf_ref[...], hcat_ref[...],
                    preferred_element_type=jnp.float32) + bz_ref[...]
        z = jnp.maximum(z, 0.0)                       # ReLU
        # TODO(synk): nn.Dropout(p=0.5) is identity in eval/inference mode; omitted.
        # MaxPool2d((1,2),(1,2)): the two pool candidates live in the two
        # lane-aligned (128-multiple) halves of z -> plain elementwise max.
        pooled = jnp.maximum(z[:, :half], z[:, half:])
        # Fully-connected head (second MXU matmul).
        out_ref[...] = jnp.dot(pooled, wfc_ref[...],
                               preferred_element_type=jnp.float32) + bfc_ref[...]
    return kernel


# --------------------------- one-time weight folding ---------------------------

def prepare_params(params, time_points):
    """Fold the linear prefix of LF_CNN.forward into one matrix (like conv-bn folding).

    Reproduces *exactly* the PyTorch graph, including the raw `.view(-1, C)` and
    `.view(B, F, T)` reinterpretations inside SpatialDeMixing (semantics preserved
    even when C != T).  On the per-sample row-major flat vector v (length C*T):
        y_flat = reshape(v, (T, C)) @ Ws^T            ==  v @ A1,  A1 = kron(I_T, Ws^T)
        y      = raw view of y_flat as (F, T)         (same flat vector, reindexed)
        z      = Conv1d(y), 'same' padding            ==  (v @ A1) @ A2
    so  z_flat = v @ (A1 @ A2) = v @ H.  H's columns are then permuted into
    (even time | odd time) halves so the kernel's MaxPool is a lane-aligned max and
    the pooled features come out in torch's flatten order.
    """
    F = NUM_SPATIAL_FILTERS
    K = TEMPORAL_KERNEL
    pad = (K - 1) // 2
    T = time_points
    assert T % 2 == 0, "MaxPool2d((1,2)) folding assumes an even number of time points"
    T2 = T // 2

    w_s = params["w_spatial"].astype(jnp.float32)   # (F, C)   Linear, bias=False
    w_c = params["w_conv"].astype(jnp.float32)      # (F, F, K) Conv1d weight
    b_c = params["b_conv"].astype(jnp.float32)      # (F,)      Conv1d bias
    w_fc = params["w_fc"].astype(jnp.float32)       # (N, F*T2) fc weight
    b_fc = params["b_fc"].astype(jnp.float32)       # (N,)      fc bias
    C = w_s.shape[1]

    # A1 (C*T, F*T): spatial de-mixing applied to consecutive C-sized chunks of the flat input.
    a1 = jnp.kron(jnp.eye(T, dtype=jnp.float32), w_s.T)
    # A2 (F*T, F*T): Conv1d as a sum of per-tap (channel-mix ⊗ time-shift) blocks;
    # the banded eye() offsets implement the 'same' zero padding.
    a2 = jnp.zeros((F * T, F * T), dtype=jnp.float32)
    for k in range(K):
        shift = jnp.eye(T, k=pad - k, dtype=jnp.float32)   # [tau, t] = 1 iff tau == t + k - pad
        a2 = a2 + jnp.kron(w_c[:, :, k].T, shift)
    h = a1 @ a2                                             # column index = f_out * T + t

    # Permute columns into even-time / odd-time halves (each F*T2 wide, torch flatten order).
    h4 = h.reshape(C * T, F, T2, 2)
    hcat = jnp.concatenate([h4[..., 0].reshape(C * T, F * T2),
                            h4[..., 1].reshape(C * T, F * T2)], axis=1)   # (C*T, F*T)
    bz_half = jnp.repeat(b_c, T2)                           # index f*T2 + u -> b_c[f]
    bz = jnp.concatenate([bz_half, bz_half]).reshape(1, F * T)

    wfc_t = w_fc.T                                          # (F*T2, N): matches pooled column order
    bfc = b_fc.reshape(1, -1)
    # NOTE: on v6e/v7x hcat/wfc_t could be cast to bfloat16 (f32 accumulation kept via
    # preferred_element_type) to halve weight DMA bytes at scale; kept f32 here since
    # the toy-size kernel is purely launch/latency bound.
    return {"hcat": hcat, "bz": bz, "wfc_t": wfc_t, "bfc": bfc}


# ------------------------------ fused forward pass ------------------------------

def lf_cnn_forward(x, folded, *, batch_tile=None):
    """Fused forward.  x: (B, C, T) float32, folded: output of prepare_params."""
    hcat, bz, wfc_t, bfc = folded["hcat"], folded["bz"], folded["wfc_t"], folded["bfc"]
    B = x.shape[0]
    ct, ft = hcat.shape
    half = ft // 2
    n_cls = wfc_t.shape[1]

    xf = x.reshape(B, ct)   # free row-major flatten; mirrors torch's contiguous .view chain

    # Batch tiling: single full-batch tile for small B (no (8,128) constraint since the
    # block equals the full array dims); 256-row tiles (multiple of 8) otherwise, with
    # Pallas masking the ragged last tile.  Weight blocks are grid-invariant -> stay in VMEM.
    if batch_tile is None:
        batch_tile = B if B <= 256 else 256
    bm = batch_tile
    grid = (pl.cdiv(B, bm),)

    cost = pl.CostEstimate(
        flops=2 * B * ct * ft + 2 * B * half * n_cls,
        transcendentals=0,
        bytes_accessed=4 * (B * ct + ct * ft + ft + half * n_cls + n_cls + B * n_cls),
    )
    # Total VMEM per step < 1 MiB even double-buffered -> far under the scoped limit
    # on v5e/v6e/v7x; no vmem_limit_bytes override needed.
    return pl.pallas_call(
        _make_fused_kernel(half),
        out_shape=jax.ShapeDtypeStruct((B, n_cls), jnp.float32),
        grid=grid,
        in_specs=[
            pl.BlockSpec((bm, ct), lambda i: (i, 0)),        # x tile: varies with grid
            pl.BlockSpec((ct, ft), lambda i: (0, 0)),        # folded operator: resident
            pl.BlockSpec((1, ft), lambda i: (0, 0)),         # conv bias: resident
            pl.BlockSpec((half, n_cls), lambda i: (0, 0)),   # fc weight: resident
            pl.BlockSpec((1, n_cls), lambda i: (0, 0)),      # fc bias: resident
        ],
        out_specs=pl.BlockSpec((bm, n_cls), lambda i: (i, 0)),
        compiler_params=pltpu.CompilerParams(
            dimension_semantics=("parallel",)),              # batch tiles are independent
        cost_estimate=cost,
    )(xf, hcat, bz, wfc_t, bfc)


# ------------------------- pure-JAX literal reference ---------------------------

def lf_cnn_reference(x, params):
    """Step-by-step transcription of LF_CNN.forward (eval mode) with original params."""
    w_s, w_c, b_c = params["w_spatial"], params["w_conv"], params["b_conv"]
    w_fc, b_fc = params["w_fc"], params["b_fc"]
    B, C, T = x.shape
    F, _, K = w_c.shape
    pad = (K - 1) // 2
    # SpatialDeMixing: x.view(-1, C) @ Ws^T, then .view(B, F, T) (raw row-major reinterpretation)
    y = (x.reshape(-1, C) @ w_s.T).reshape(B, F, T)
    # Conv1d(F, F, K, padding=pad) + bias, ReLU (Dropout is identity in eval)
    y_pad = jnp.pad(y, ((0, 0), (0, 0), (pad, pad)))
    z = jnp.zeros((B, F, T), jnp.float32)
    for k in range(K):
        z = z + jnp.einsum("oi,bit->bot", w_c[:, :, k], y_pad[:, :, k:k + T])
    z = jnp.maximum(z + b_c[None, :, None], 0.0)
    # MaxPool2d((1,2),(1,2)) over the time axis
    pooled = jnp.maximum(z[:, :, 0::2], z[:, :, 1::2])
    feat = pooled.reshape(B, -1)                     # x.view(B, -1)
    return feat @ w_fc.T + b_fc[None, :]


# ------------------------------------- main -------------------------------------

if __name__ == "__main__":
    # C != T on purpose: exercises/validates the raw .view() semantics the module relies on.
    B, C, T, NCLS = 2, 24, 16, 4
    F = NUM_SPATIAL_FILTERS
    T2 = T // 2

    key = jax.random.PRNGKey(0)
    kx, k1, k2, k3, k4, k5 = jax.random.split(key, 6)
    x = jax.random.normal(kx, (B, C, T), dtype=jnp.float32)

    params = dict(
        w_spatial=jax.random.normal(k1, (F, C), jnp.float32) * 0.1,
        w_conv=jax.random.normal(k2, (F, F, TEMPORAL_KERNEL), jnp.float32) * 0.05,
        b_conv=jax.random.normal(k3, (F,), jnp.float32) * 0.01,
        w_fc=jax.random.normal(k4, (NCLS, F * T2), jnp.float32) * 0.05,
        b_fc=jax.random.normal(k5, (NCLS,), jnp.float32) * 0.01,
    )

    # One-time weight folding (analogue of conv-bn folding), then the jitted fused forward.
    folded = prepare_params(params, T)
    forward = jax.jit(lf_cnn_forward)
    logits = forward(x, folded)
    jax.block_until_ready(logits)

    ref = lf_cnn_reference(x, params)
    assert logits.shape == (B, NCLS)
    # Tolerance set by TPU default matmul precision (bf16 operand passes) used on BOTH paths,
    # not by kernel approximations — the folding itself is exact.
    np.testing.assert_allclose(np.asarray(logits), np.asarray(ref), rtol=1e-2, atol=1e-2)
    print("KERNEL_OK")
</pallas_src>

<mosaic_0001>
module attributes {stable_mosaic.version = 11 : i64} {
  func.func @kernel(%arg0: i32, %arg1: memref<2x384xf32, #tpu.memory_space<vmem>>, %arg2: memref<384x512xf32, #tpu.memory_space<vmem>>, %arg3: memref<1x512xf32, #tpu.memory_space<vmem>>, %arg4: memref<256x4xf32, #tpu.memory_space<vmem>>, %arg5: memref<1x4xf32, #tpu.memory_space<vmem>>, %arg6: memref<2x4xf32, #tpu.memory_space<vmem>>) attributes {dimension_semantics = [#tpu.dimension_semantics<parallel>], iteration_bounds = array<i64: 1>, scalar_prefetch = 0 : i64, scratch_operands = 0 : i64, tpu.core_type = #tpu.core_type<tc>, window_params = [{transform_indices = @transform_0, window_bounds = array<i64: 2, 384>}, {pipeline_mode = #tpu.pipeline_mode<synchronous>, transform_indices = @transform_1, window_bounds = array<i64: 384, 512>}, {pipeline_mode = #tpu.pipeline_mode<synchronous>, transform_indices = @transform_2, window_bounds = array<i64: 1, 512>}, {pipeline_mode = #tpu.pipeline_mode<synchronous>, transform_indices = @transform_3, window_bounds = array<i64: 256, 4>}, {pipeline_mode = #tpu.pipeline_mode<synchronous>, transform_indices = @transform_4, window_bounds = array<i64: 1, 4>}, {transform_indices = @transform_5, window_bounds = array<i64: 2, 4>}]} {
    %c0 = arith.constant 0 : index
    %c0_0 = arith.constant 0 : index
    %0 = vector.load %arg1[%c0, %c0_0] : memref<2x384xf32, #tpu.memory_space<vmem>>, vector<2x384xf32>
    %c0_1 = arith.constant 0 : index
    %c0_2 = arith.constant 0 : index
    %1 = vector.load %arg2[%c0_1, %c0_2] : memref<384x512xf32, #tpu.memory_space<vmem>>, vector<384x512xf32>
    %cst = arith.constant dense<0.000000e+00> : vector<2x512xf32>
    %2 = tpu.matmul %0, %1, %cst {dimension_numbers = #tpu.dot_dimension_numbers<[1], [0], [0], [1], [0, 0, 1, 1], [], []>} : vector<2x384xf32>, vector<384x512xf32>, vector<2x512xf32> -> vector<2x512xf32>
    %c0_3 = arith.constant 0 : index
    %c0_4 = arith.constant 0 : index
    %3 = vector.load %arg3[%c0_3, %c0_4] : memref<1x512xf32, #tpu.memory_space<vmem>>, vector<1x512xf32>
    %4 = vector.broadcast %3 : vector<1x512xf32> to vector<2x512xf32>
    %5 = arith.addf %2, %4 : vector<2x512xf32>
    %cst_5 = arith.constant 0.000000e+00 : f32
    %6 = vector.broadcast %cst_5 : f32 to vector<2x512xf32>
    %7 = arith.maximumf %5, %6 : vector<2x512xf32>
    %8 = vector.extract_strided_slice %7 {offsets = [0, 0], sizes = [2, 256], strides = [1, 1]} : vector<2x512xf32> to vector<2x256xf32>
    %9 = vector.extract_strided_slice %7 {offsets = [0, 256], sizes = [2, 256], strides = [1, 1]} : vector<2x512xf32> to vector<2x256xf32>
    %10 = arith.maximumf %8, %9 : vector<2x256xf32>
    %c0_6 = arith.constant 0 : index
    %c0_7 = arith.constant 0 : index
    %11 = vector.load %arg4[%c0_6, %c0_7] : memref<256x4xf32, #tpu.memory_space<vmem>>, vector<256x4xf32>
    %cst_8 = arith.constant dense<0.000000e+00> : vector<2x4xf32>
    %12 = tpu.matmul %10, %11, %cst_8 {dimension_numbers = #tpu.dot_dimension_numbers<[1], [0], [0], [1], [0, 0, 1, 1], [], []>} : vector<2x256xf32>, vector<256x4xf32>, vector<2x4xf32> -> vector<2x4xf32>
    %c0_9 = arith.constant 0 : index
    %c0_10 = arith.constant 0 : index
    %13 = vector.load %arg5[%c0_9, %c0_10] : memref<1x4xf32, #tpu.memory_space<vmem>>, vector<1x4xf32>
    %14 = vector.broadcast %13 : vector<1x4xf32> to vector<2x4xf32>
    %15 = arith.addf %12, %14 : vector<2x4xf32>
    %c0_11 = arith.constant 0 : index
    %c0_12 = arith.constant 0 : index
    %16 = vector.load %arg6[%c0_11, %c0_12] : memref<2x4xf32, #tpu.memory_space<vmem>>, vector<2x4xf32>
    tpu.vector_store %arg6[%c0_11, %c0_12], %15 {strides = array<i32>} : memref<2x4xf32, #tpu.memory_space<vmem>>, vector<2x4xf32>,
    return
  }
  func.func @transform_0(%arg0: i32) -> (i32, i32) {
    %c0_i32 = arith.constant 0 : i32
    %c0_i32_0 = arith.constant 0 : i32
    return %arg0, %c0_i32 : i32, i32
  }
  func.func @transform_1(%arg0: i32) -> (i32, i32) {
    %c0_i32 = arith.constant 0 : i32
    %c0_i32_0 = arith.constant 0 : i32
    %c0_i32_1 = arith.constant 0 : i32
    return %c0_i32, %c0_i32_0 : i32, i32
  }
  func.func @transform_2(%arg0: i32) -> (i32, i32) {
    %c0_i32 = arith.constant 0 : i32
    %c0_i32_0 = arith.constant 0 : i32
    %c0_i32_1 = arith.constant 0 : i32
    return %c0_i32, %c0_i32_0 : i32, i32
  }
  func.func @transform_3(%arg0: i32) -> (i32, i32) {
    %c0_i32 = arith.constant 0 : i32
    %c0_i32_0 = arith.constant 0 : i32
    %c0_i32_1 = arith.constant 0 : i32
    return %c0_i32, %c0_i32_0 : i32, i32
  }
  func.func @transform_4(%arg0: i32) -> (i32, i32) {
    %c0_i32 = arith.constant 0 : i32
    %c0_i32_0 = arith.constant 0 : i32
    %c0_i32_1 = arith.constant 0 : i32
    return %c0_i32, %c0_i32_0 : i32, i32
  }
  func.func @transform_5(%arg0: i32) -> (i32, i32) {
    %c0_i32 = arith.constant 0 : i32
    %c0_i32_0 = arith.constant 0 : i32
    return %arg0, %c0_i32 : i32, i32
  }
}

</mosaic_0001>

<llo_original>
// kernel: lf_cnn_forward.1
$region0: #{lf_cnn_forward.1}
  #allocation0 [shape = 'u32[]', space=smem, size = 0x4, offset = 0x4, fixed_abs, tag = 'smem constant byte address 0x4 - core index']
  #allocation1 [shape = 'u32[72,128]{1,0:T(1,128)}', space=vmem, size = 0x9000, scoped, tag = 'internal scratch']
  %s0 = inlined_call_operand.vmem [shape: f32[2,384], index: 0, kind: input, shape index: {}]
  %s1 = inlined_call_operand.hbm [shape: f32[384,512], index: 1, kind: input, shape index: {}]
  %s2 = inlined_call_operand.vmem [shape: f32[1,512], index: 2, kind: input, shape index: {}]
  %s3 = inlined_call_operand.vmem [shape: f32[256,4], index: 3, kind: input, shape index: {}]
  %s4 = inlined_call_operand.vmem [shape: f32[1,4], index: 4, kind: input, shape index: {}]
  %s5 = inlined_call_operand.hbm [shape: f32[2,4], index: 5, kind: output, shape index: {}]
  %s6 = sld [smem:[#allocation0]]
  $region34: #{lf_cnn_forward.1} parent=0
    _
  %s8 = ssub.s32 1, %s6
  %s9 = scalar_select 0, %s8, %s6
  $region1: #{lf_cnn_forward.1} parent=0
    #allocation2 [shape = 'u8[786432]{0}', space=vmem, size = 0xc0000, scoped, tag = 'input window, operand 1, single buffered']
    #allocation3 [shape = 's32[1]{0}', space=sflag, size = 0x4, scoped, tag = 'scoped memory for lf_cnn_forward.1']
    #allocation4 [shape = 's32[1]{0}', space=sflag, size = 0x4, scoped, tag = 'scoped memory for lf_cnn_forward.1']
    #allocation5 [shape = 'u8[1024]{0}', space=vmem, size = 0x400, scoped, tag = 'output window, operand 0, single buffered']
    %10 = vsyncpa [#allocation3], 0
    %11 = vsyncpa [#allocation4], 0
    // Predicated region
    $region2: #{lf_cnn_forward.1} parent=1 // pred_check
      _
    $region3: #{lf_cnn_forward.1} parent=1 // pred_check_branch
      %13 = sbr.rel (0) target = $region5
    $region4: #{lf_cnn_forward.1} parent=1 // pred_region
      _
    $region5: #{lf_cnn_forward.1} parent=1 // pred_fallthru
      _
    // Predicated region
    $region6: #{lf_cnn_forward.1} parent=1 // pred_check
      _
    $region7: #{lf_cnn_forward.1} parent=1 // pred_check_branch
      %15 = sbr.rel (0) target = $region9
    $region8: #{lf_cnn_forward.1} parent=1 // pred_region
      %17 = vsyncadd [#allocation3], 0
      %s18 = sshll.u32 %s1, 4
      %s19 = int_to_ptr.hbm [resolvable:$true] %s18
      %s20 = sshll.u32 [#allocation2], 4
      %s21 = int_to_ptr.vmem [resolvable:$true] %s20
      %26 = dma.hbm_to_vmem [thread:$0]  %s19, 24576, %s21, [#allocation3], 512, 512, 32
    $region9: #{lf_cnn_forward.1} parent=1 // pred_fallthru
      _
    // Predicated region
    $region10: #{lf_cnn_forward.1} parent=1 // pred_check
      _
    $region11: #{lf_cnn_forward.1} parent=1 // pred_check_branch
      %28 = sbr.rel (0) target = $region13
    $region12: #{lf_cnn_forward.1} parent=1 // pred_region
      _
    $region13: #{lf_cnn_forward.1} parent=1 // pred_fallthru
      _
    // Predicated region
    $region14: #{lf_cnn_forward.1} parent=1 // pred_check
      _
    $region15: #{lf_cnn_forward.1} parent=1 // pred_check_branch
      %30 = sbr.rel (0) target = $region17
    $region16: #{lf_cnn_forward.1} parent=1 // pred_region
      _
    $region17: #{lf_cnn_forward.1} parent=1 // pred_fallthru
      _
    // Predicated region
    $region18: #{lf_cnn_forward.1} parent=1 // pred_check
      _
    $region19: #{lf_cnn_forward.1} parent=1 // pred_check_branch
      %32 = sbr.rel (0) target = $region21
    $region20: #{lf_cnn_forward.1} parent=1 // pred_region
      _
    $region21: #{lf_cnn_forward.1} parent=1 // pred_fallthru
      _
    // Predicated region
    $region22: #{lf_cnn_forward.1} parent=1 // pred_check
      _
    $region23: #{lf_cnn_forward.1} parent=1 // pred_check_branch
      %34 = sbr.rel (0) target = $region25
    $region24: #{lf_cnn_forward.1} parent=1 // pred_region
      %36 = dma.done [#allocation3], 24576
    $region25: #{lf_cnn_forward.1} parent=1 // pred_fallthru
      _
    %v37 = vld [vmem:[%s0] sm:$0x3f]
    %v38 = vld [vmem:[#allocation2] sm:$0xff]
    %v39 = vld [vmem:[#allocation2 + $0x8] sm:$0xff]
    %v40 = vld [vmem:[#allocation2 + $0x10] sm:$0xff]
    %v41 = vld [vmem:[#allocation2 + $0x18] sm:$0xff]
    %v42 = vld [vmem:[#allocation2 + $0x20] sm:$0xff]
    %v43 = vld [vmem:[#allocation2 + $0x28] sm:$0xff]
    %v44 = vld [vmem:[#allocation2 + $0x30] sm:$0xff]
    %v45 = vld [vmem:[#allocation2 + $0x38] sm:$0xff]
    %v46 = vld [vmem:[#allocation2 + $0x40] sm:$0xff]
    %v47 = vld [vmem:[#allocation2 + $0x48] sm:$0xff]
    %v48 = vld [vmem:[#allocation2 + $0x50] sm:$0xff]
    %v49 = vld [vmem:[#allocation2 + $0x58] sm:$0xff]
    %v50 = vld [vmem:[#allocation2 + $0x60] sm:$0xff]
    %v51 = vld [vmem:[#allocation2 + $0x68] sm:$0xff]
    %v52 = vld [vmem:[#allocation2 + $0x70] sm:$0xff]
    %v53 = vld [vmem:[#allocation2 + $0x78] sm:$0xff]
    %v54 = vld [vmem:[#allocation2 + $0x80] sm:$0xff]
    %v55 = vld [vmem:[#allocation2 + $0x88] sm:$0xff]
    %v56 = vld [vmem:[#allocation2 + $0x90] sm:$0xff]
    %v57 = vld [vmem:[#allocation2 + $0x98] sm:$0xff]
    %v58 = vld [vmem:[#allocation2 + $0xa0] sm:$0xff]
    %v59 = vld [vmem:[#allocation2 + $0xa8] sm:$0xff]
    %v60 = vld [vmem:[#allocation2 + $0xb0] sm:$0xff]
    %v61 = vld [vmem:[#allocation2 + $0xb8] sm:$0xff]
    %v62 = vld [vmem:[#allocation2 + $0xc0] sm:$0xff]
    %v63 = vld [vmem:[#allocation2 + $0xc8] sm:$0xff]
    %v64 = vld [vmem:[#allocation2 + $0xd0] sm:$0xff]
    %v65 = vld [vmem:[#allocation2 + $0xd8] sm:$0xff]
    %v66 = vld [vmem:[#allocation2 + $0xe0] sm:$0xff]
    %v67 = vld [vmem:[#allocation2 + $0xe8] sm:$0xff]
    %v68 = vld [vmem:[#allocation2 + $0xf0] sm:$0xff]
    %v69 = vld [vmem:[#allocation2 + $0xf8] sm:$0xff]
    %v70 = vld [vmem:[#allocation2 + $0x100] sm:$0xff]
    %v71 = vld [vmem:[#allocation2 + $0x108] sm:$0xff]
    %v72 = vld [vmem:[#allocation2 + $0x110] sm:$0xff]
    %v73 = vld [vmem:[#allocation2 + $0x118] sm:$0xff]
    %v74 = vld [vmem:[#allocation2 + $0x120] sm:$0xff]
    %v75 = vld [vmem:[#allocation2 + $0x128] sm:$0xff]
    %v76 = vld [vmem:[#allocation2 + $0x130] sm:$0xff]
    %v77 = vld [vmem:[#allocation2 + $0x138] sm:$0xff]
    %v78 = vld [vmem:[#allocation2 + $0x140] sm:$0xff]
    %v79 = vld [vmem:[#allocation2 + $0x148] sm:$0xff]
    %v80 = vld [vmem:[#allocation2 + $0x150] sm:$0xff]
    %v81 = vld [vmem:[#allocation2 + $0x158] sm:$0xff]
    %v82 = vld [vmem:[#allocation2 + $0x160] sm:$0xff]
    %v83 = vld [vmem:[#allocation2 + $0x168] sm:$0xff]
    %v84 = vld [vmem:[#allocation2 + $0x170] sm:$0xff]
    %v85 = vld [vmem:[#allocation2 + $0x178] sm:$0xff]
    %v86 = vld [vmem:[#allocation2 + $0x180] sm:$0xff]
    %v87 = vld [vmem:[#allocation2 + $0x188] sm:$0xff]
    %v88 = vld [vmem:[#allocation2 + $0x190] sm:$0xff]
    %v89 = vld [vmem:[#allocation2 + $0x198] sm:$0xff]
    %v90 = vld [vmem:[#allocation2 + $0x1a0] sm:$0xff]
    %v91 = vld [vmem:[#allocation2 + $0x1a8] sm:$0xff]
    %v92 = vld [vmem:[#allocation2 + $0x1b0] sm:$0xff]
    %v93 = vld [vmem:[#allocation2 + $0x1b8] sm:$0xff]
    %v94 = vld [vmem:[#allocation2 + $0x1c0] sm:$0xff]
    %v95 = vld [vmem:[#allocation2 + $0x1c8] sm:$0xff]
    %v96 = vld [vmem:[#allocation2 + $0x1d0] sm:$0xff]
    %v97 = vld [vmem:[#allocation2 + $0x1d8] sm:$0xff]
    %v98 = vld [vmem:[#allocation2 + $0x1e0] sm:$0xff]
    %v99 = vld [vmem:[#allocation2 + $0x1e8] sm:$0xff]
    %v100 = vld [vmem:[#allocation2 + $0x1f0] sm:$0xff]
    %v101 = vld [vmem:[#allocation2 + $0x1f8] sm:$0xff]
    %v102 = vld [vmem:[#allocation2 + $0x200] sm:$0xff]
    %v103 = vld [vmem:[#allocation2 + $0x208] sm:$0xff]
    %v104 = vld [vmem:[#allocation2 + $0x210] sm:$0xff]
    %v105 = vld [vmem:[#allocation2 + $0x218] sm:$0xff]
    %v106 = vld [vmem:[#allocation2 + $0x220] sm:$0xff]
    %v107 = vld [vmem:[#allocation2 + $0x228] sm:$0xff]
    %v108 = vld [vmem:[#allocation2 + $0x230] sm:$0xff]
    %v109 = vld [vmem:[#allocation2 + $0x238] sm:$0xff]
    %v110 = vld [vmem:[#allocation2 + $0x240] sm:$0xff]
    %v111 = vld [vmem:[#allocation2 + $0x248] sm:$0xff]
    %v112 = vld [vmem:[#allocation2 + $0x250] sm:$0xff]
    %v113 = vld [vmem:[#allocation2 + $0x258] sm:$0xff]
    %v114 = vld [vmem:[#allocation2 + $0x260] sm:$0xff]
    %v115 = vld [vmem:[#allocation2 + $0x268] sm:$0xff]
    %v116 = vld [vmem:[#allocation2 + $0x270] sm:$0xff]
    %v117 = vld [vmem:[#allocation2 + $0x278] sm:$0xff]
    %v118 = vld [vmem:[#allocation2 + $0x280] sm:$0xff]
    %v119 = vld [vmem:[#allocation2 + $0x288] sm:$0xff]
    %v120 = vld [vmem:[#allocation2 + $0x290] sm:$0xff]
    %v121 = vld [vmem:[#allocation2 + $0x298] sm:$0xff]
    %v122 = vld [vmem:[#allocation2 + $0x2a0] sm:$0xff]
    %v123 = vld [vmem:[#allocation2 + $0x2a8] sm:$0xff]
    %v124 = vld [vmem:[#allocation2 + $0x2b0] sm:$0xff]
    %v125 = vld [vmem:[#allocation2 + $0x2b8] sm:$0xff]
    %v126 = vld [vmem:[#allocation2 + $0x2c0] sm:$0xff]
    %v127 = vld [vmem:[#allocation2 + $0x2c8] sm:$0xff]
    %v128 = vld [vmem:[#allocation2 + $0x2d0] sm:$0xff]
    %v129 = vld [vmem:[#allocation2 + $0x2d8] sm:$0xff]
    %v130 = vld [vmem:[#allocation2 + $0x2e0] sm:$0xff]
    %v131 = vld [vmem:[#allocation2 + $0x2e8] sm:$0xff]
    %v132 = vld [vmem:[#allocation2 + $0x2f0] sm:$0xff]
    %v133 = vld [vmem:[#allocation2 + $0x2f8] sm:$0xff]
    %v134 = vld [vmem:[#allocation2 + $0x300] sm:$0xff]
    %v135 = vld [vmem:[#allocation2 + $0x308] sm:$0xff]
    %v136 = vld [vmem:[#allocation2 + $0x310] sm:$0xff]
    %v137 = vld [vmem:[#allocation2 + $0x318] sm:$0xff]
    %v138 = vld [vmem:[#allocation2 + $0x320] sm:$0xff]
    %v139 = vld [vmem:[#allocation2 + $0x328] sm:$0xff]
    %v140 = vld [vmem:[#allocation2 + $0x330] sm:$0xff]
    %v141 = vld [vmem:[#allocation2 + $0x338] sm:$0xff]
    %v142 = vld [vmem:[#allocation2 + $0x340] sm:$0xff]
    %v143 = vld [vmem:[#allocation2 + $0x348] sm:$0xff]
    %v144 = vld [vmem:[#allocation2 + $0x350] sm:$0xff]
    %v145 = vld [vmem:[#allocation2 + $0x358] sm:$0xff]
    %v146 = vld [vmem:[#allocation2 + $0x360] sm:$0xff]
    %v147 = vld [vmem:[#allocation2 + $0x368] sm:$0xff]
    %v148 = vld [vmem:[#allocation2 + $0x370] sm:$0xff]
    %v149 = vld [vmem:[#allocation2 + $0x378] sm:$0xff]
    %v150 = vld [vmem:[#allocation2 + $0x380] sm:$0xff]
    %v151 = vld [vmem:[#allocation2 + $0x388] sm:$0xff]
    %v152 = vld [vmem:[#allocation2 + $0x390] sm:$0xff]
    %v153 = vld [vmem:[#allocation2 + $0x398] sm:$0xff]
    %v154 = vld [vmem:[#allocation2 + $0x3a0] sm:$0xff]
    %v155 = vld [vmem:[#allocation2 + $0x3a8] sm:$0xff]
    %v156 = vld [vmem:[#allocation2 + $0x3b0] sm:$0xff]
    %v157 = vld [vmem:[#allocation2 + $0x3b8] sm:$0xff]
    %v158 = vld [vmem:[#allocation2 + $0x3c0] sm:$0xff]
    %v159 = vld [vmem:[#allocation2 + $0x3c8] sm:$0xff]
    %v160 = vld [vmem:[#allocation2 + $0x3d0] sm:$0xff]
    %v161 = vld [vmem:[#allocation2 + $0x3d8] sm:$0xff]
    %v162 = vld [vmem:[#allocation2 + $0x3e0] sm:$0xff]
    %v163 = vld [vmem:[#allocation2 + $0x3e8] sm:$0xff]
    %v164 = vld [vmem:[#allocation2 + $0x3f0] sm:$0xff]
    %v165 = vld [vmem:[#allocation2 + $0x3f8] sm:$0xff]
    %v166 = vld [vmem:[#allocation2 + $0x400] sm:$0xff]
    %v167 = vld [vmem:[#allocation2 + $0x408] sm:$0xff]
    %v168 = vld [vmem:[#allocation2 + $0x410] sm:$0xff]
    %v169 = vld [vmem:[#allocation2 + $0x418] sm:$0xff]
    %v170 = vld [vmem:[#allocation2 + $0x420] sm:$0xff]
    %v171 = vld [vmem:[#allocation2 + $0x428] sm:$0xff]
    %v172 = vld [vmem:[#allocation2 + $0x430] sm:$0xff]
    %v173 = vld [vmem:[#allocation2 + $0x438] sm:$0xff]
    %v174 = vld [vmem:[#allocation2 + $0x440] sm:$0xff]
    %v175 = vld [vmem:[#allocation2 + $0x448] sm:$0xff]
    %v176 = vld [vmem:[#allocation2 + $0x450] sm:$0xff]
    %v177 = vld [vmem:[#allocation2 + $0x458] sm:$0xff]
    %v178 = vld [vmem:[#allocation2 + $0x460] sm:$0xff]
    %v179 = vld [vmem:[#allocation2 + $0x468] sm:$0xff]
    %v180 = vld [vmem:[#allocation2 + $0x470] sm:$0xff]
    %v181 = vld [vmem:[#allocation2 + $0x478] sm:$0xff]
    %v182 = vld [vmem:[#allocation2 + $0x480] sm:$0xff]
    %v183 = vld [vmem:[#allocation2 + $0x488] sm:$0xff]
    %v184 = vld [vmem:[#allocation2 + $0x490] sm:$0xff]
    %v185 = vld [vmem:[#allocation2 + $0x498] sm:$0xff]
    %v186 = vld [vmem:[#allocation2 + $0x4a0] sm:$0xff]
    %v187 = vld [vmem:[#allocation2 + $0x4a8] sm:$0xff]
    %v188 = vld [vmem:[#allocation2 + $0x4b0] sm:$0xff]
    %v189 = vld [vmem:[#allocation2 + $0x4b8] sm:$0xff]
    %v190 = vld [vmem:[#allocation2 + $0x4c0] sm:$0xff]
    %v191 = vld [vmem:[#allocation2 + $0x4c8] sm:$0xff]
    %v192 = vld [vmem:[#allocation2 + $0x4d0] sm:$0xff]
    %v193 = vld [vmem:[#allocation2 + $0x4d8] sm:$0xff]
    %v194 = vld [vmem:[#allocation2 + $0x4e0] sm:$0xff]
    %v195 = vld [vmem:[#allocation2 + $0x4e8] sm:$0xff]
    %v196 = vld [vmem:[#allocation2 + $0x4f0] sm:$0xff]
    %v197 = vld [vmem:[#allocation2 + $0x4f8] sm:$0xff]
    %v198 = vld [vmem:[#allocation2 + $0x500] sm:$0xff]
    %v199 = vld [vmem:[#allocation2 + $0x508] sm:$0xff]
    %v200 = vld [vmem:[#allocation2 + $0x510] sm:$0xff]
    %v201 = vld [vmem:[#allocation2 + $0x518] sm:$0xff]
    %v202 = vld [vmem:[#allocation2 + $0x520] sm:$0xff]
    %v203 = vld [vmem:[#allocation2 + $0x528] sm:$0xff]
    %v204 = vld [vmem:[#allocation2 + $0x530] sm:$0xff]
    %v205 = vld [vmem:[#allocation2 + $0x538] sm:$0xff]
    %v206 = vld [vmem:[#allocation2 + $0x540] sm:$0xff]
    %v207 = vld [vmem:[#allocation2 + $0x548] sm:$0xff]
    %v208 = vld [vmem:[#allocation2 + $0x550] sm:$0xff]
    %v209 = vld [vmem:[#allocation2 + $0x558] sm:$0xff]
    %v210 = vld [vmem:[#allocation2 + $0x560] sm:$0xff]
    %v211 = vld [vmem:[#allocation2 + $0x568] sm:$0xff]
    %v212 = vld [vmem:[#allocation2 + $0x570] sm:$0xff]
    %v213 = vld [vmem:[#allocation2 + $0x578] sm:$0xff]
    %v214 = vld [vmem:[#allocation2 + $0x580] sm:$0xff]
    %v215 = vld [vmem:[#allocation2 + $0x588] sm:$0xff]
    %v216 = vld [vmem:[#allocation2 + $0x590] sm:$0xff]
    %v217 = vld [vmem:[#allocation2 + $0x598] sm:$0xff]
    %v218 = vld [vmem:[#allocation2 + $0x5a0] sm:$0xff]
    %v219 = vld [vmem:[#allocation2 + $0x5a8] sm:$0xff]
    %v220 = vld [vmem:[#allocation2 + $0x5b0] sm:$0xff]
    %v221 = vld [vmem:[#allocation2 + $0x5b8] sm:$0xff]
    %v222 = vld [vmem:[#allocation2 + $0x5c0] sm:$0xff]
    %v223 = vld [vmem:[#allocation2 + $0x5c8] sm:$0xff]
    %v224 = vld [vmem:[#allocation2 + $0x5d0] sm:$0xff]
    %v225 = vld [vmem:[#allocation2 + $0x5d8] sm:$0xff]
    %v226 = vld [vmem:[#allocation2 + $0x5e0] sm:$0xff]
    %v227 = vld [vmem:[#allocation2 + $0x5e8] sm:$0xff]
    %v228 = vld [vmem:[#allocation2 + $0x5f0] sm:$0xff]
    %v229 = vld [vmem:[#allocation2 + $0x5f8] sm:$0xff]
    %v230 = vld [vmem:[%s2] sm:$0xf]
    %v232 = vperm.slane %v230, 0
    %v233 = vperm.slane %v230, 1
    %v234 = vperm.slane %v230, 2
    %v235 = vperm.slane %v230, 3
    %241 = vst [vmem:[#allocation1] ss:$4 sm:$0xff] %v37
    %v242 = vld.sshfl [vmem:[#allocation1] sm:$0xff pattern:$0x73625140]
    %v243 = vld.sshfl [vmem:[#allocation1 + $0x8] sm:$0xff pattern:$0x73625140]
    %v244 = vld.sshfl [vmem:[#allocation1 + $0x10] sm:$0xff pattern:$0x73625140]
    %248 = vmatpush.msra.mxu0 %v98
    %249 = vmatpush.msra.mxu0 %v94
    %250 = vmatpush.msra.mxu0 %v90
    %251 = vmatpush.msra.mxu0 %v86
    %252 = vmatpush.msra.mxu0 %v82
    %253 = vmatpush.msra.mxu0 %v78
    %254 = vmatpush.msra.mxu0 %v74
    %255 = vmatpush.msra.mxu0 %v70
    %256 = vmatpush.msra.mxu0 %v66
    %257 = vmatpush.msra.mxu0 %v62
    %258 = vmatpush.msra.mxu0 %v58
    %259 = vmatpush.msra.mxu0 %v54
    %260 = vmatpush.msra.mxu0 %v50
    %261 = vmatpush.msra.mxu0 %v46
    %262 = vmatpush.msra.mxu0 %v42
    %263 = vmatpush.msra.mxu0 %v38
    %264 = vmatmul.f32.gmra.mxu0 %v242
    %v265 = vpop.f32.mrf.mxu0
    %v266 = vadd.f32 %v232, %v265
    %267 = vdwg.mxu0
    %268 = vmatpush.msra.mxu0 %v162
    %269 = vmatpush.msra.mxu0 %v158
    %270 = vmatpush.msra.mxu0 %v154
    %271 = vmatpush.msra.mxu0 %v150
    %272 = vmatpush.msra.mxu0 %v146
    %273 = vmatpush.msra.mxu0 %v142
    %274 = vmatpush.msra.mxu0 %v138
    %275 = vmatpush.msra.mxu0 %v134
    %276 = vmatpush.msra.mxu0 %v130
    %277 = vmatpush.msra.mxu0 %v126
    %278 = vmatpush.msra.mxu0 %v122
    %279 = vmatpush.msra.mxu0 %v118
    %280 = vmatpush.msra.mxu0 %v114
    %281 = vmatpush.msra.mxu0 %v110
    %282 = vmatpush.msra.mxu0 %v106
    %283 = vmatpush.msra.mxu0 %v102
    %284 = vmatmul.f32.gmra.mxu0 %v243
    %v285 = vpop.f32.mrf.mxu0
    %v286 = vadd.f32 %v266, %v285
    %287 = vdwg.mxu0
    %288 = vmatpush.msra.mxu0 %v226
    %289 = vmatpush.msra.mxu0 %v222
    %290 = vmatpush.msra.mxu0 %v218
    %291 = vmatpush.msra.mxu0 %v214
    %292 = vmatpush.msra.mxu0 %v210
    %293 = vmatpush.msra.mxu0 %v206
    %294 = vmatpush.msra.mxu0 %v202
    %295 = vmatpush.msra.mxu0 %v198
    %296 = vmatpush.msra.mxu0 %v194
    %297 = vmatpush.msra.mxu0 %v190
    %298 = vmatpush.msra.mxu0 %v186
    %299 = vmatpush.msra.mxu0 %v182
    %300 = vmatpush.msra.mxu0 %v178
    %301 = vmatpush.msra.mxu0 %v174
    %302 = vmatpush.msra.mxu0 %v170
    %303 = vmatpush.msra.mxu0 %v166
    %304 = vmatmul.f32.gmra.mxu0 %v244
    %v305 = vpop.f32.mrf.mxu0
    %v306 = vadd.f32 %v286, %v305
    %307 = vdwg.mxu0
    %308 = vmatpush.msra.mxu0 %v99
    %309 = vmatpush.msra.mxu0 %v95
    %310 = vmatpush.msra.mxu0 %v91
    %311 = vmatpush.msra.mxu0 %v87
    %312 = vmatpush.msra.mxu0 %v83
    %313 = vmatpush.msra.mxu0 %v79
    %314 = vmatpush.msra.mxu0 %v75
    %315 = vmatpush.msra.mxu0 %v71
    %316 = vmatpush.msra.mxu0 %v67
    %317 = vmatpush.msra.mxu0 %v63
    %318 = vmatpush.msra.mxu0 %v59
    %319 = vmatpush.msra.mxu0 %v55
    %320 = vmatpush.msra.mxu0 %v51
    %321 = vmatpush.msra.mxu0 %v47
    %322 = vmatpush.msra.mxu0 %v43
    %323 = vmatpush.msra.mxu0 %v39
    %324 = vmatmul.f32.gmra.mxu0 %v242
    %v325 = vpop.f32.mrf.mxu0
    %v326 = vadd.f32 %v233, %v325
    %327 = vdwg.mxu0
    %328 = vmatpush.msra.mxu0 %v163
    %329 = vmatpush.msra.mxu0 %v159
    %330 = vmatpush.msra.mxu0 %v155
    %331 = vmatpush.msra.mxu0 %v151
    %332 = vmatpush.msra.mxu0 %v147
    %333 = vmatpush.msra.mxu0 %v143
    %334 = vmatpush.msra.mxu0 %v139
    %335 = vmatpush.msra.mxu0 %v135
    %336 = vmatpush.msra.mxu0 %v131
    %337 = vmatpush.msra.mxu0 %v127
    %338 = vmatpush.msra.mxu0 %v123
    %339 = vmatpush.msra.mxu0 %v119
    %340 = vmatpush.msra.mxu0 %v115
    %341 = vmatpush.msra.mxu0 %v111
    %342 = vmatpush.msra.mxu0 %v107
    %343 = vmatpush.msra.mxu0 %v103
    %344 = vmatmul.f32.gmra.mxu0 %v243
    %v345 = vpop.f32.mrf.mxu0
    %v346 = vadd.f32 %v326, %v345
    %347 = vdwg.mxu0
    %348 = vmatpush.msra.mxu0 %v227
    %349 = vmatpush.msra.mxu0 %v223
    %350 = vmatpush.msra.mxu0 %v219
    %351 = vmatpush.msra.mxu0 %v215
    %352 = vmatpush.msra.mxu0 %v211
    %353 = vmatpush.msra.mxu0 %v207
    %354 = vmatpush.msra.mxu0 %v203
    %355 = vmatpush.msra.mxu0 %v199
    %356 = vmatpush.msra.mxu0 %v195
    %357 = vmatpush.msra.mxu0 %v191
    %358 = vmatpush.msra.mxu0 %v187
    %359 = vmatpush.msra.mxu0 %v183
    %360 = vmatpush.msra.mxu0 %v179
    %361 = vmatpush.msra.mxu0 %v175
    %362 = vmatpush.msra.mxu0 %v171
    %363 = vmatpush.msra.mxu0 %v167
    %364 = vmatmul.f32.gmra.mxu0 %v244
    %v365 = vpop.f32.mrf.mxu0
    %v366 = vadd.f32 %v346, %v365
    %367 = vdwg.mxu0
    %368 = vmatpush.msra.mxu0 %v100
    %369 = vmatpush.msra.mxu0 %v96
    %370 = vmatpush.msra.mxu0 %v92
    %371 = vmatpush.msra.mxu0 %v88
    %372 = vmatpush.msra.mxu0 %v84
    %373 = vmatpush.msra.mxu0 %v80
    %374 = vmatpush.msra.mxu0 %v76
    %375 = vmatpush.msra.mxu0 %v72
    %376 = vmatpush.msra.mxu0 %v68
    %377 = vmatpush.msra.mxu0 %v64
    %378 = vmatpush.msra.mxu0 %v60
    %379 = vmatpush.msra.mxu0 %v56
    %380 = vmatpush.msra.mxu0 %v52
    %381 = vmatpush.msra.mxu0 %v48
    %382 = vmatpush.msra.mxu0 %v44
    %383 = vmatpush.msra.mxu0 %v40
    %384 = vmatmul.f32.gmra.mxu0 %v242
    %v385 = vpop.f32.mrf.mxu0
    %v386 = vadd.f32 %v234, %v385
    %387 = vdwg.mxu0
    %388 = vmatpush.msra.mxu0 %v164
    %389 = vmatpush.msra.mxu0 %v160
    %390 = vmatpush.msra.mxu0 %v156
    %391 = vmatpush.msra.mxu0 %v152
    %392 = vmatpush.msra.mxu0 %v148
    %393 = vmatpush.msra.mxu0 %v144
    %394 = vmatpush.msra.mxu0 %v140
    %395 = vmatpush.msra.mxu0 %v136
    %396 = vmatpush.msra.mxu0 %v132
    %397 = vmatpush.msra.mxu0 %v128
    %398 = vmatpush.msra.mxu0 %v124
    %399 = vmatpush.msra.mxu0 %v120
    %400 = vmatpush.msra.mxu0 %v116
    %401 = vmatpush.msra.mxu0 %v112
    %402 = vmatpush.msra.mxu0 %v108
    %403 = vmatpush.msra.mxu0 %v104
    %404 = vmatmul.f32.gmra.mxu0 %v243
    %v405 = vpop.f32.mrf.mxu0
    %v406 = vadd.f32 %v386, %v405
    %407 = vdwg.mxu0
    %408 = vmatpush.msra.mxu0 %v228
    %409 = vmatpush.msra.mxu0 %v224
    %410 = vmatpush.msra.mxu0 %v220
    %411 = vmatpush.msra.mxu0 %v216
    %412 = vmatpush.msra.mxu0 %v212
    %413 = vmatpush.msra.mxu0 %v208
    %414 = vmatpush.msra.mxu0 %v204
    %415 = vmatpush.msra.mxu0 %v200
    %416 = vmatpush.msra.mxu0 %v196
    %417 = vmatpush.msra.mxu0 %v192
    %418 = vmatpush.msra.mxu0 %v188
    %419 = vmatpush.msra.mxu0 %v184
    %420 = vmatpush.msra.mxu0 %v180
    %421 = vmatpush.msra.mxu0 %v176
    %422 = vmatpush.msra.mxu0 %v172
    %423 = vmatpush.msra.mxu0 %v168
    %424 = vmatmul.f32.gmra.mxu0 %v244
    %v425 = vpop.f32.mrf.mxu0
    %v426 = vadd.f32 %v406, %v425
    %427 = vdwg.mxu0
    %428 = vmatpush.msra.mxu0 %v101
    %429 = vmatpush.msra.mxu0 %v97
    %430 = vmatpush.msra.mxu0 %v93
    %431 = vmatpush.msra.mxu0 %v89
    %432 = vmatpush.msra.mxu0 %v85
    %433 = vmatpush.msra.mxu0 %v81
    %434 = vmatpush.msra.mxu0 %v77
    %435 = vmatpush.msra.mxu0 %v73
    %436 = vmatpush.msra.mxu0 %v69
    %437 = vmatpush.msra.mxu0 %v65
    %438 = vmatpush.msra.mxu0 %v61
    %439 = vmatpush.msra.mxu0 %v57
    %440 = vmatpush.msra.mxu0 %v53
    %441 = vmatpush.msra.mxu0 %v49
    %442 = vmatpush.msra.mxu0 %v45
    %443 = vmatpush.msra.mxu0 %v41
    %444 = vmatmul.f32.gmra.mxu0 %v242
    %v445 = vpop.f32.mrf.mxu0
    %v446 = vadd.f32 %v235, %v445
    %447 = vdwg.mxu0
    %448 = vmatpush.msra.mxu0 %v165
    %449 = vmatpush.msra.mxu0 %v161
    %450 = vmatpush.msra.mxu0 %v157
    %451 = vmatpush.msra.mxu0 %v153
    %452 = vmatpush.msra.mxu0 %v149
    %453 = vmatpush.msra.mxu0 %v145
    %454 = vmatpush.msra.mxu0 %v141
    %455 = vmatpush.msra.mxu0 %v137
    %456 = vmatpush.msra.mxu0 %v133
    %457 = vmatpush.msra.mxu0 %v129
    %458 = vmatpush.msra.mxu0 %v125
    %459 = vmatpush.msra.mxu0 %v121
    %460 = vmatpush.msra.mxu0 %v117
    %461 = vmatpush.msra.mxu0 %v113
    %462 = vmatpush.msra.mxu0 %v109
    %463 = vmatpush.msra.mxu0 %v105
    %464 = vmatmul.f32.gmra.mxu0 %v243
    %v465 = vpop.f32.mrf.mxu0
    %v466 = vadd.f32 %v446, %v465
    %467 = vdwg.mxu0
    %468 = vmatpush.msra.mxu0 %v229
    %469 = vmatpush.msra.mxu0 %v225
    %470 = vmatpush.msra.mxu0 %v221
    %471 = vmatpush.msra.mxu0 %v217
    %472 = vmatpush.msra.mxu0 %v213
    %473 = vmatpush.msra.mxu0 %v209
    %474 = vmatpush.msra.mxu0 %v205
    %475 = vmatpush.msra.mxu0 %v201
    %476 = vmatpush.msra.mxu0 %v197
    %477 = vmatpush.msra.mxu0 %v193
    %478 = vmatpush.msra.mxu0 %v189
    %479 = vmatpush.msra.mxu0 %v185
    %480 = vmatpush.msra.mxu0 %v181
    %481 = vmatpush.msra.mxu0 %v177
    %482 = vmatpush.msra.mxu0 %v173
    %483 = vmatpush.msra.mxu0 %v169
    %484 = vmatmul.f32.gmra.mxu0 %v244
    %v485 = vpop.f32.mrf.mxu0
    %v486 = vadd.f32 %v466, %v485
    %487 = vdwg.mxu0
    %v488 = vmax.f32 %v306, 0.0
    %v489 = vmax.f32 %v366, 0.0
    %v490 = vmax.f32 %v426, 0.0
    %v491 = vmax.f32 %v486, 0.0
    %v492 = vmax.f32 %v488, %v490
    %v493 = vmax.f32 %v489, %v491
    %v494 = vld [vmem:[%s3] sm:$0xff]
    %v495 = vld [vmem:[%s3 + $0x8] sm:$0xff]
    %v496 = vld [vmem:[%s3 + $0x10] sm:$0xff]
    %v497 = vld [vmem:[%s3 + $0x18] sm:$0xff]
    %v498 = vld [vmem:[%s3 + $0x20] sm:$0xff]
    %v499 = vld [vmem:[%s3 + $0x28] sm:$0xff]
    %v500 = vld [vmem:[%s3 + $0x30] sm:$0xff]
    %v501 = vld [vmem:[%s3 + $0x38] sm:$0xff]
    %v502 = vld [vmem:[%s3 + $0x40] sm:$0xff]
    %v503 = vld [vmem:[%s3 + $0x48] sm:$0xff]
    %v504 = vld [vmem:[%s3 + $0x50] sm:$0xff]
    %v505 = vld [vmem:[%s3 + $0x58] sm:$0xff]
    %v506 = vld [vmem:[%s3 + $0x60] sm:$0xff]
    %v507 = vld [vmem:[%s3 + $0x68] sm:$0xff]
    %v508 = vld [vmem:[%s3 + $0x70] sm:$0xff]
    %v509 = vld [vmem:[%s3 + $0x78] sm:$0xff]
    %v510 = vld [vmem:[%s3 + $0x80] sm:$0xff]
    %v511 = vld [vmem:[%s3 + $0x88] sm:$0xff]
    %v512 = vld [vmem:[%s3 + $0x90] sm:$0xff]
    %v513 = vld [vmem:[%s3 + $0x98] sm:$0xff]
    %v514 = vld [vmem:[%s3 + $0xa0] sm:$0xff]
    %v515 = vld [vmem:[%s3 + $0xa8] sm:$0xff]
    %v516 = vld [vmem:[%s3 + $0xb0] sm:$0xff]
    %v517 = vld [vmem:[%s3 + $0xb8] sm:$0xff]
    %v518 = vld [vmem:[%s3 + $0xc0] sm:$0xff]
    %v519 = vld [vmem:[%s3 + $0xc8] sm:$0xff]
    %v520 = vld [vmem:[%s3 + $0xd0] sm:$0xff]
    %v521 = vld [vmem:[%s3 + $0xd8] sm:$0xff]
    %v522 = vld [vmem:[%s3 + $0xe0] sm:$0xff]
    %v523 = vld [vmem:[%s3 + $0xe8] sm:$0xff]
    %v524 = vld [vmem:[%s3 + $0xf0] sm:$0xff]
    %v525 = vld [vmem:[%s3 + $0xf8] sm:$0xff]
    %v526 = vld [vmem:[%s4] sm:$0x1]
    %v528 = vperm.slane %v526, 0
    %530 = vmatpush.msra.mxu0 %v509
    %531 = vmatpush.msra.mxu0 %v508
    %532 = vmatpush.msra.mxu0 %v507
    %533 = vmatpush.msra.mxu0 %v506
    %534 = vmatpush.msra.mxu0 %v505
    %535 = vmatpush.msra.mxu0 %v504
    %536 = vmatpush.msra.mxu0 %v503
    %537 = vmatpush.msra.mxu0 %v502
    %538 = vmatpush.msra.mxu0 %v501
    %539 = vmatpush.msra.mxu0 %v500
    %540 = vmatpush.msra.mxu0 %v499
    %541 = vmatpush.msra.mxu0 %v498
    %542 = vmatpush.msra.mxu0 %v497
    %543 = vmatpush.msra.mxu0 %v496
    %544 = vmatpush.msra.mxu0 %v495
    %545 = vmatpush.msra.mxu0 %v494
    %546 = vmatmul.f32.gmra.mxu0 %v492
    %v547 = vpop.f32.mrf.mxu0
    %v548 = vadd.f32 %v528, %v547
    %549 = vdwg.mxu0
    %550 = vmatpush.msra.mxu0 %v525
    %551 = vmatpush.msra.mxu0 %v524
    %552 = vmatpush.msra.mxu0 %v523
    %553 = vmatpush.msra.mxu0 %v522
    %554 = vmatpush.msra.mxu0 %v521
    %555 = vmatpush.msra.mxu0 %v520
    %556 = vmatpush.msra.mxu0 %v519
    %557 = vmatpush.msra.mxu0 %v518
    %558 = vmatpush.msra.mxu0 %v517
    %559 = vmatpush.msra.mxu0 %v516
    %560 = vmatpush.msra.mxu0 %v515
    %561 = vmatpush.msra.mxu0 %v514
    %562 = vmatpush.msra.mxu0 %v513
    %563 = vmatpush.msra.mxu0 %v512
    %564 = vmatpush.msra.mxu0 %v511
    %565 = vmatpush.msra.mxu0 %v510
    %566 = vmatmul.f32.gmra.mxu0 %v493
    %v567 = vpop.f32.mrf.mxu0
    %v568 = vadd.f32 %v548, %v567
    %569 = vdwg.mxu0
    %vm570 = vcmask 25600
    %571 = vst.msk [vmem:[#allocation5] sm:$0x3] %vm570, %v568
    // Predicated region
    $region26: #{lf_cnn_forward.1} parent=1 // pred_check
      _
    $region27: #{lf_cnn_forward.1} parent=1 // pred_check_branch
      %573 = sbr.rel (0) target = $region29
    $region28: #{lf_cnn_forward.1} parent=1 // pred_region
      %575 = vsyncadd [#allocation4], 0
      %s577 = sshll.u32 [#allocation5], 4
      %s578 = int_to_ptr.vmem [resolvable:$true] %s577
      %s579 = sshll.u32 %s5, 4
      %s580 = int_to_ptr.hbm [resolvable:$true] %s579
      %582 = dma.vmem_to_hbm [thread:$0]  %s578, 32, %s580, [#allocation4]
    $region29: #{lf_cnn_forward.1} parent=1 // pred_fallthru
      _
    // Predicated region
    $region30: #{lf_cnn_forward.1} parent=1 // pred_check
      _
    $region31: #{lf_cnn_forward.1} parent=1 // pred_check_branch
      %584 = sbr.rel (0) target = $region33
    $region32: #{lf_cnn_forward.1} parent=1 // pred_region
      %586 = dma.done [#allocation4], 32
    $region33: #{lf_cnn_forward.1} parent=1 // pred_fallthru
      _
    %587 = vsyncpa [#allocation3], 1
    %588 = vsyncpa [#allocation4], 1

</llo_original>
